<compile_context>
chip_gen: v7x
topology: tpu7x:2x2x1
jax: 0.10.0
libtpu: 0.0.40
codegen_flags: <defaults>
</compile_context>

<pallas_src>
import functools

import jax
import jax.numpy as jnp
from jax.experimental import pallas as pl
from jax.experimental.pallas import tpu as pltpu

_EPS = 1e-5  # nn.BatchNorm2d default


def _mod(x, d):
    """x % d for int32 arrays; bitwise AND when d is a power of two."""
    if d & (d - 1) == 0:
        return jnp.bitwise_and(x, d - 1)
    return jnp.remainder(x, d)


def _max_layer_kernel(gamma_ref, beta_ref, x_ref, o_ref, *, h, w):
    """One grid step == CB whole channels.

    gamma_ref, beta_ref : (1, CB, 1) f32 VMEM blocks (per-step channel slice)
    x_ref, o_ref        : (N, CB, H*W) f32 VMEM blocks; channels on sublanes,
                          H*W on lanes (lane-dense stores).
    """
    n, cb, hw = x_ref.shape
    x = x_ref[...]

    # (1, 1, HW) lane iota -> boundary masks; broadcast over (N, CB) in where.
    pos = jax.lax.broadcasted_iota(jnp.int32, (1, 1, hw), 2)
    col = _mod(pos, w)          # column within a row
    neg = jnp.float32(-jnp.inf)

    # --- MaxPool2d(kernel_size=3, stride=1, padding=1), separable -----------
    # pltpu.roll follows jnp.roll semantics: roll(v, s)[i] == v[i - s].
    # Horizontal pass: neighbors (h, w-1) and (h, w+1); -inf outside the row.
    x_l = jnp.where(col > 0, pltpu.roll(x, 1, axis=2), neg)
    x_r = jnp.where(col < w - 1, pltpu.roll(x, hw - 1, axis=2), neg)
    rmax = jnp.maximum(x, jnp.maximum(x_l, x_r))
    # Vertical pass on the row-max: neighbors (h-1, w) and (h+1, w).
    r_u = jnp.where(pos >= w, pltpu.roll(rmax, w, axis=2), neg)
    r_d = jnp.where(pos < hw - w, pltpu.roll(rmax, hw - w, axis=2), neg)
    m = jnp.maximum(rmax, jnp.maximum(r_u, r_d))

    # --- BatchNorm2d (training-mode batch stats over N*H*W) + ReLU ----------
    # Vectorized per-channel stats, two-pass variance (biased, eps=1e-5).
    inv_cnt = jnp.float32(1.0 / (n * hw))
    mean = jnp.sum(m, axis=(0, 2), keepdims=True) * inv_cnt           # (1,CB,1)
    ctr = m - mean
    var = jnp.sum(ctr * ctr, axis=(0, 2), keepdims=True) * inv_cnt    # (1,CB,1)
    scale = gamma_ref[...] * jax.lax.rsqrt(var + _EPS)                # (1,CB,1)
    shift = beta_ref[...] - mean * scale
    o_ref[...] = jnp.maximum(m * scale + shift, 0.0)   # single lane-dense store


def _choose_channel_block(c, hw, n, *, max_block_bytes=2 * 1024 * 1024):
    """Channels per grid step.

    Constraints / preferences:
      * cb divides C and (cb % 8 == 0 or cb == C)   -> legal sublane block dim
      * double-buffered footprint ~ 4x block (+ temporaries) stays well inside
        every generation's scoped VMEM (v5e 16 MiB default, v7x 32 MiB scoped)
      * prefer >= 2 grid steps (ideally even) so v7x's two TensorCores share
        the "parallel" channel axis; within that, the largest cb wins.
    """
    bytes_per_channel = n * hw * 4
    candidates = [cb for cb in range(1, c + 1)
                  if c % cb == 0 and (cb % 8 == 0 or cb == c)]
    fitting = [cb for cb in candidates
               if cb * bytes_per_channel <= max_block_bytes]
    if not fitting:
        fitting = [min(candidates)]      # smallest legal block even if large
    multi = [cb for cb in fitting if c // cb >= 2]
    if multi:
        even = [cb for cb in multi if (c // cb) % 2 == 0]
        return max(even) if even else max(multi)
    return max(fitting)


def max_layer_forward(x, gamma, beta):
    """x: (N, C, H, W) float32 NCHW. Returns relu(bn(maxpool3x3(x))) in NCHW."""
    n, c, h, w = x.shape
    hw = h * w
    cb = _choose_channel_block(c, hw, n)
    grid = (c // cb,)

    x3 = x.reshape(n, c, hw)             # free view of contiguous NCHW
    gamma3 = gamma.reshape(1, c, 1)
    beta3 = beta.reshape(1, c, 1)

    kernel = functools.partial(_max_layer_kernel, h=h, w=w)
    out3 = pl.pallas_call(
        kernel,
        out_shape=jax.ShapeDtypeStruct((n, c, hw), x.dtype),
        grid=grid,
        in_specs=[
            pl.BlockSpec((1, cb, 1), lambda i: (0, i, 0)),    # gamma slice
            pl.BlockSpec((1, cb, 1), lambda i: (0, i, 0)),    # beta slice
            pl.BlockSpec((n, cb, hw), lambda i: (0, i, 0)),   # x slab
        ],
        out_specs=pl.BlockSpec((n, cb, hw), lambda i: (0, i, 0)),
        compiler_params=pltpu.CompilerParams(
            dimension_semantics=("parallel",),
            vmem_limit_bytes=32 * 1024 * 1024,
        ),
    )(gamma3, beta3, x3)

    return out3.reshape(n, c, h, w)


def _reference_forward(x, gamma, beta):
    """Pure-JAX reference of the PyTorch forward (training-mode BN)."""
    n, c, h, w = x.shape
    xpad = jnp.pad(x, ((0, 0), (0, 0), (1, 1), (1, 1)),
                   constant_values=-jnp.inf)
    patches = [xpad[:, :, dh:dh + h, dw:dw + w]
               for dh in range(3) for dw in range(3)]
    m = functools.reduce(jnp.maximum, patches)
    mean = jnp.mean(m, axis=(0, 2, 3), keepdims=True)
    var = jnp.mean((m - mean) ** 2, axis=(0, 2, 3), keepdims=True)
    y = (m - mean) / jnp.sqrt(var + _EPS)
    y = y * gamma.reshape(1, c, 1, 1) + beta.reshape(1, c, 1, 1)
    return jnp.maximum(y, 0.0)


if __name__ == "__main__":
    key = jax.random.PRNGKey(0)
    N, C, H, W = 2, 4, 16, 16

    x = jax.random.normal(key, (N, C, H, W), dtype=jnp.float32)

    # Deterministic BatchNorm affine parameters (shape (C,) per nn.BatchNorm2d).
    gamma = 1.0 + 0.1 * jnp.arange(C, dtype=jnp.float32)   # weight
    beta = 0.05 * jnp.arange(C, dtype=jnp.float32) - 0.1   # bias

    out = max_layer_forward(x, gamma, beta)
    out = jax.block_until_ready(out)

    ref = _reference_forward(x, gamma, beta)
    assert out.shape == (N, C, H, W)
    assert jnp.allclose(out, ref, rtol=1e-4, atol=1e-4), (
        f"max abs err: {jnp.max(jnp.abs(out - ref))}")

    print("KERNEL_OK")
</pallas_src>

<mosaic_0001>
module attributes {stable_mosaic.version = 11 : i64} {
  func.func @_max_layer_kernel(%arg0: i32, %arg1: memref<1x4x1xf32, #tpu.memory_space<vmem>>, %arg2: memref<1x4x1xf32, #tpu.memory_space<vmem>>, %arg3: memref<2x4x256xf32, #tpu.memory_space<vmem>>, %arg4: memref<2x4x256xf32, #tpu.memory_space<vmem>>) attributes {dimension_semantics = [#tpu.dimension_semantics<parallel>], iteration_bounds = array<i64: 1>, scalar_prefetch = 0 : i64, scratch_operands = 0 : i64, tpu.core_type = #tpu.core_type<tc>, window_params = [{transform_indices = @transform_0, window_bounds = array<i64: 1, 4, 1>}, {transform_indices = @transform_1, window_bounds = array<i64: 1, 4, 1>}, {transform_indices = @transform_2, window_bounds = array<i64: 2, 4, 256>}, {transform_indices = @transform_3, window_bounds = array<i64: 2, 4, 256>}]} {
    %c0 = arith.constant 0 : index
    %c0_0 = arith.constant 0 : index
    %c0_1 = arith.constant 0 : index
    %0 = vector.load %arg3[%c0, %c0_0, %c0_1] : memref<2x4x256xf32, #tpu.memory_space<vmem>>, vector<2x4x256xf32>
    %1 = tpu.iota {dimensions = array<i32: 2>} : vector<1x1x256xi32>
    %c15_i32 = arith.constant 15 : i32
    %2 = vector.broadcast %c15_i32 : i32 to vector<1x1x256xi32>
    %3 = arith.andi %1, %2 : vector<1x1x256xi32>
    %c0_i32 = arith.constant 0 : i32
    %4 = vector.broadcast %c0_i32 : i32 to vector<1x1x256xi32>
    %5 = arith.cmpi sgt, %3, %4 : vector<1x1x256xi32>
    %c1_i32 = arith.constant 1 : i32
    %6 = tpu.dynamic_rotate %0 by %c1_i32 dim 2 : vector<2x4x256xf32>, i32 -> vector<2x4x256xf32>
    %cst = arith.constant 0xFF800000 : f32
    %7 = vector.shape_cast %5 : vector<1x1x256xi1> to vector<1x1x256xi1>
    %8 = vector.broadcast %7 : vector<1x1x256xi1> to vector<2x4x256xi1>
    %9 = vector.broadcast %cst : f32 to vector<2x4x256xf32>
    %10 = arith.select %8, %6, %9 : vector<2x4x256xi1>, vector<2x4x256xf32>
    %c15_i32_2 = arith.constant 15 : i32
    %11 = vector.broadcast %c15_i32_2 : i32 to vector<1x1x256xi32>
    %12 = arith.cmpi slt, %3, %11 : vector<1x1x256xi32>
    %c255_i32 = arith.constant 255 : i32
    %13 = tpu.dynamic_rotate %0 by %c255_i32 dim 2 : vector<2x4x256xf32>, i32 -> vector<2x4x256xf32>
    %cst_3 = arith.constant 0xFF800000 : f32
    %14 = vector.shape_cast %12 : vector<1x1x256xi1> to vector<1x1x256xi1>
    %15 = vector.broadcast %14 : vector<1x1x256xi1> to vector<2x4x256xi1>
    %16 = vector.broadcast %cst_3 : f32 to vector<2x4x256xf32>
    %17 = arith.select %15, %13, %16 : vector<2x4x256xi1>, vector<2x4x256xf32>
    %18 = arith.maximumf %10, %17 : vector<2x4x256xf32>
    %19 = arith.maximumf %0, %18 : vector<2x4x256xf32>
    %c16_i32 = arith.constant 16 : i32
    %20 = vector.broadcast %c16_i32 : i32 to vector<1x1x256xi32>
    %21 = arith.cmpi sge, %1, %20 : vector<1x1x256xi32>
    %c16_i32_4 = arith.constant 16 : i32
    %22 = tpu.dynamic_rotate %19 by %c16_i32_4 dim 2 : vector<2x4x256xf32>, i32 -> vector<2x4x256xf32>
    %cst_5 = arith.constant 0xFF800000 : f32
    %23 = vector.shape_cast %21 : vector<1x1x256xi1> to vector<1x1x256xi1>
    %24 = vector.broadcast %23 : vector<1x1x256xi1> to vector<2x4x256xi1>
    %25 = vector.broadcast %cst_5 : f32 to vector<2x4x256xf32>
    %26 = arith.select %24, %22, %25 : vector<2x4x256xi1>, vector<2x4x256xf32>
    %c240_i32 = arith.constant 240 : i32
    %27 = vector.broadcast %c240_i32 : i32 to vector<1x1x256xi32>
    %28 = arith.cmpi slt, %1, %27 : vector<1x1x256xi32>
    %c240_i32_6 = arith.constant 240 : i32
    %29 = tpu.dynamic_rotate %19 by %c240_i32_6 dim 2 : vector<2x4x256xf32>, i32 -> vector<2x4x256xf32>
    %cst_7 = arith.constant 0xFF800000 : f32
    %30 = vector.shape_cast %28 : vector<1x1x256xi1> to vector<1x1x256xi1>
    %31 = vector.broadcast %30 : vector<1x1x256xi1> to vector<2x4x256xi1>
    %32 = vector.broadcast %cst_7 : f32 to vector<2x4x256xf32>
    %33 = arith.select %31, %29, %32 : vector<2x4x256xi1>, vector<2x4x256xf32>
    %34 = arith.maximumf %26, %33 : vector<2x4x256xf32>
    %35 = arith.maximumf %19, %34 : vector<2x4x256xf32>
    %cst_8 = arith.constant dense<0.000000e+00> : vector<4xf32>
    %36 = vector.multi_reduction <add>, %35, %cst_8 [0, 2] : vector<2x4x256xf32> to vector<4xf32>
    %37 = vector.shape_cast %36 : vector<4xf32> to vector<1x4x1xf32>
    %cst_9 = arith.constant 0.001953125 : f32
    %38 = vector.broadcast %cst_9 : f32 to vector<1x4x1xf32>
    %39 = arith.mulf %37, %38 : vector<1x4x1xf32>
    %40 = vector.broadcast %39 : vector<1x4x1xf32> to vector<2x4x256xf32>
    %41 = arith.subf %35, %40 : vector<2x4x256xf32>
    %42 = arith.mulf %41, %41 : vector<2x4x256xf32>
    %cst_10 = arith.constant dense<0.000000e+00> : vector<4xf32>
    %43 = vector.multi_reduction <add>, %42, %cst_10 [0, 2] : vector<2x4x256xf32> to vector<4xf32>
    %44 = vector.shape_cast %43 : vector<4xf32> to vector<1x4x1xf32>
    %cst_11 = arith.constant 0.001953125 : f32
    %45 = vector.broadcast %cst_11 : f32 to vector<1x4x1xf32>
    %46 = arith.mulf %44, %45 : vector<1x4x1xf32>
    %c0_12 = arith.constant 0 : index
    %c0_13 = arith.constant 0 : index
    %c0_14 = arith.constant 0 : index
    %47 = vector.load %arg1[%c0_12, %c0_13, %c0_14] : memref<1x4x1xf32, #tpu.memory_space<vmem>>, vector<1x4x1xf32>
    %cst_15 = arith.constant 9.99999974E-6 : f32
    %48 = vector.broadcast %cst_15 : f32 to vector<1x4x1xf32>
    %49 = arith.addf %46, %48 : vector<1x4x1xf32>
    %50 = math.rsqrt %49 : vector<1x4x1xf32>
    %51 = arith.mulf %47, %50 : vector<1x4x1xf32>
    %c0_16 = arith.constant 0 : index
    %c0_17 = arith.constant 0 : index
    %c0_18 = arith.constant 0 : index
    %52 = vector.load %arg2[%c0_16, %c0_17, %c0_18] : memref<1x4x1xf32, #tpu.memory_space<vmem>>, vector<1x4x1xf32>
    %53 = arith.mulf %39, %51 : vector<1x4x1xf32>
    %54 = arith.subf %52, %53 : vector<1x4x1xf32>
    %55 = vector.broadcast %51 : vector<1x4x1xf32> to vector<2x4x256xf32>
    %56 = arith.mulf %35, %55 : vector<2x4x256xf32>
    %57 = vector.broadcast %54 : vector<1x4x1xf32> to vector<2x4x256xf32>
    %58 = arith.addf %56, %57 : vector<2x4x256xf32>
    %cst_19 = arith.constant 0.000000e+00 : f32
    %59 = vector.broadcast %cst_19 : f32 to vector<2x4x256xf32>
    %60 = arith.maximumf %58, %59 : vector<2x4x256xf32>
    %c0_20 = arith.constant 0 : index
    %c0_21 = arith.constant 0 : index
    %c0_22 = arith.constant 0 : index
    %61 = vector.load %arg4[%c0_20, %c0_21, %c0_22] : memref<2x4x256xf32, #tpu.memory_space<vmem>>, vector<2x4x256xf32>
    tpu.vector_store %arg4[%c0_20, %c0_21, %c0_22], %60 {strides = array<i32>} : memref<2x4x256xf32, #tpu.memory_space<vmem>>, vector<2x4x256xf32>,
    return
  }
  func.func @transform_0(%arg0: i32) -> (i32, i32, i32) {
    %c0_i32 = arith.constant 0 : i32
    %c0_i32_0 = arith.constant 0 : i32
    %c0_i32_1 = arith.constant 0 : i32
    return %c0_i32, %arg0, %c0_i32_0 : i32, i32, i32
  }
  func.func @transform_1(%arg0: i32) -> (i32, i32, i32) {
    %c0_i32 = arith.constant 0 : i32
    %c0_i32_0 = arith.constant 0 : i32
    %c0_i32_1 = arith.constant 0 : i32
    return %c0_i32, %arg0, %c0_i32_0 : i32, i32, i32
  }
  func.func @transform_2(%arg0: i32) -> (i32, i32, i32) {
    %c0_i32 = arith.constant 0 : i32
    %c0_i32_0 = arith.constant 0 : i32
    %c0_i32_1 = arith.constant 0 : i32
    return %c0_i32, %arg0, %c0_i32_0 : i32, i32, i32
  }
  func.func @transform_3(%arg0: i32) -> (i32, i32, i32) {
    %c0_i32 = arith.constant 0 : i32
    %c0_i32_0 = arith.constant 0 : i32
    %c0_i32_1 = arith.constant 0 : i32
    return %c0_i32, %arg0, %c0_i32_0 : i32, i32, i32
  }
}

</mosaic_0001>

<llo_original>
// kernel: tpu_custom_call.1
$region0: #{tpu_custom_call.1}
  #allocation0 [shape = 'u32[]', space=smem, size = 0x4, offset = 0x4, fixed_abs, tag = 'smem constant byte address 0x4 - core index']
  #allocation1 [shape = 'u32[144,128]{1,0:T(1,128)}', space=vmem, size = 0x12000, scoped, tag = 'internal scratch']
  %s0 = inlined_call_operand.vmem [shape: f32[1,4,1], index: 0, kind: input, shape index: {}]
  %s1 = inlined_call_operand.vmem [shape: f32[1,4,1], index: 1, kind: input, shape index: {}]
  %s2 = inlined_call_operand.vmem [shape: f32[2,4,256], index: 2, kind: input, shape index: {}]
  %s3 = inlined_call_operand.hbm [shape: f32[2,4,256], index: 3, kind: output, shape index: {}]
  %s4 = sld [smem:[#allocation0]]
  $region22: #{tpu_custom_call.1} parent=0
    _
  %s6 = ssub.s32 1, %s4
  %s7 = scalar_select 0, %s6, %s4
  $region1: #{tpu_custom_call.1} parent=0
    #allocation2 [shape = 'u8[8192]{0}', space=vmem, size = 0x2000, scoped, tag = 'output window, operand 0, single buffered']
    #allocation3 [shape = 's32[1]{0}', space=sflag, size = 0x4, scoped, tag = 'scoped memory for tpu_custom_call.1']
    %8 = vsyncpa [#allocation3], 0
    // Predicated region
    $region2: #{tpu_custom_call.1} parent=1 // pred_check
      _
    $region3: #{tpu_custom_call.1} parent=1 // pred_check_branch
      %10 = sbr.rel (0) target = $region5
    $region4: #{tpu_custom_call.1} parent=1 // pred_region
      _
    $region5: #{tpu_custom_call.1} parent=1 // pred_fallthru
      _
    // Predicated region
    $region6: #{tpu_custom_call.1} parent=1 // pred_check
      _
    $region7: #{tpu_custom_call.1} parent=1 // pred_check_branch
      %12 = sbr.rel (0) target = $region9
    $region8: #{tpu_custom_call.1} parent=1 // pred_region
      _
    $region9: #{tpu_custom_call.1} parent=1 // pred_fallthru
      _
    // Predicated region
    $region10: #{tpu_custom_call.1} parent=1 // pred_check
      _
    $region11: #{tpu_custom_call.1} parent=1 // pred_check_branch
      %14 = sbr.rel (0) target = $region13
    $region12: #{tpu_custom_call.1} parent=1 // pred_region
      _
    $region13: #{tpu_custom_call.1} parent=1 // pred_fallthru
      _
    %v15 = vld [vmem:[%s2] sm:$0xff]
    %v16 = vld [vmem:[%s2 + $0x8] sm:$0xff]
    %v17 = vlaneseq
    %v18 = vand.u32 %v17, 127
    %v19 = vadd.s32 %v18, 128
    %v20 = vand.u32 %v18, 15
    %v21 = vand.u32 %v19, 15
    %vm22 = vcmp.gt.s32.totalorder %v20, 0
    %vm23 = vcmp.gt.s32.totalorder %v21, 0
    %v26 = vcombine.high %v15, %v15
    %v27 = vcombine.high %v16, %v16
    %30 = vrot.lane.b32.xlu0 %v15, 1
    %v31 = vpop.permute.xlu0 %30
    %32 = vrot.lane.b32.xlu0 %v16, 1
    %v33 = vpop.permute.xlu0 %32
    %34 = vrot.lane.b32.xlu0 %v26, 1
    %v35 = vpop.permute.xlu0 %34
    %36 = vrot.lane.b32.xlu0 %v27, 1
    %v37 = vpop.permute.xlu0 %36
    %vm38 = vcmp.lt.s32.totalorder %v18, 1
    %v39 = vsel %vm38, %v31, %v35
    %v40 = vsel %vm38, %v33, %v37
    %v41 = vsel %vm38, %v35, %v31
    %v42 = vsel %vm38, %v37, %v33
    %v43 = vsel %vm22, 1, 0
    %v44 = vsel %vm23, 1, 0
    %vm45 = vcmp.eq.s32.totalorder %v43, 1
    %vm46 = vcmp.eq.s32.totalorder %v44, 1
    %v47 = vsel %vm45, %v41, -inf
    %v48 = vsel %vm46, %v39, -inf
    %v49 = vsel %vm45, %v42, -inf
    %v50 = vsel %vm46, %v40, -inf
    %vm51 = vcmp.lt.s32.totalorder %v20, 15
    %vm52 = vcmp.lt.s32.totalorder %v21, 15
    %53 = vrot.lane.b32.xlu0 %v15, 127
    %v54 = vpop.permute.xlu0 %53
    %55 = vrot.lane.b32.xlu0 %v16, 127
    %v56 = vpop.permute.xlu0 %55
    %57 = vrot.lane.b32.xlu0 %v26, 127
    %v58 = vpop.permute.xlu0 %57
    %59 = vrot.lane.b32.xlu0 %v27, 127
    %v60 = vpop.permute.xlu0 %59
    %vm61 = vcmp.lt.s32.totalorder %v18, 127
    %v62 = vsel %vm61, %v54, %v58
    %v63 = vsel %vm61, %v56, %v60
    %v64 = vsel %vm61, %v58, %v54
    %v65 = vsel %vm61, %v60, %v56
    %v66 = vsel %vm51, 1, 0
    %v67 = vsel %vm52, 1, 0
    %vm68 = vcmp.eq.s32.totalorder %v66, 1
    %vm69 = vcmp.eq.s32.totalorder %v67, 1
    %v70 = vsel %vm68, %v62, -inf
    %v71 = vsel %vm69, %v64, -inf
    %v72 = vsel %vm68, %v63, -inf
    %v73 = vsel %vm69, %v65, -inf
    %v74 = vmax.f32 %v47, %v70
    %v75 = vmax.f32 %v48, %v71
    %v76 = vmax.f32 %v49, %v72
    %v77 = vmax.f32 %v50, %v73
    %v82 = vcombine.low %v74, %v75
    %v83 = vcombine.low %v76, %v77
    %v86 = vmax.f32 %v15, %v82
    %v87 = vmax.f32 %v16, %v83
    %vm88 = vcmp.ge.s32.totalorder %v18, 16
    %vm89 = vcmp.ge.s32.totalorder %v19, 16
    %v92 = vcombine.high %v86, %v86
    %v93 = vcombine.high %v87, %v87
    %96 = vrot.lane.b32.xlu0 %v86, 16
    %v97 = vpop.permute.xlu0 %96
    %98 = vrot.lane.b32.xlu0 %v87, 16
    %v99 = vpop.permute.xlu0 %98
    %100 = vrot.lane.b32.xlu0 %v92, 16
    %v101 = vpop.permute.xlu0 %100
    %102 = vrot.lane.b32.xlu0 %v93, 16
    %v103 = vpop.permute.xlu0 %102
    %vm104 = vcmp.lt.s32.totalorder %v18, 16
    %v105 = vsel %vm104, %v97, %v101
    %v106 = vsel %vm104, %v99, %v103
    %v107 = vsel %vm104, %v101, %v97
    %v108 = vsel %vm104, %v103, %v99
    %v109 = vsel %vm88, 1, 0
    %v110 = vsel %vm89, 1, 0
    %vm111 = vcmp.eq.s32.totalorder %v109, 1
    %vm112 = vcmp.eq.s32.totalorder %v110, 1
    %v113 = vsel %vm111, %v107, -inf
    %v114 = vsel %vm112, %v105, -inf
    %v115 = vsel %vm111, %v108, -inf
    %v116 = vsel %vm112, %v106, -inf
    %vm117 = vcmp.lt.s32.totalorder %v18, 240
    %vm118 = vcmp.lt.s32.totalorder %v19, 240
    %119 = vrot.lane.b32.xlu0 %v86, 112
    %v120 = vpop.permute.xlu0 %119
    %121 = vrot.lane.b32.xlu0 %v87, 112
    %v122 = vpop.permute.xlu0 %121
    %123 = vrot.lane.b32.xlu0 %v92, 112
    %v124 = vpop.permute.xlu0 %123
    %125 = vrot.lane.b32.xlu0 %v93, 112
    %v126 = vpop.permute.xlu0 %125
    %vm127 = vcmp.lt.s32.totalorder %v18, 112
    %v128 = vsel %vm127, %v120, %v124
    %v129 = vsel %vm127, %v122, %v126
    %v130 = vsel %vm127, %v124, %v120
    %v131 = vsel %vm127, %v126, %v122
    %v132 = vsel %vm117, 1, 0
    %v133 = vsel %vm118, 1, 0
    %vm134 = vcmp.eq.s32.totalorder %v132, 1
    %vm135 = vcmp.eq.s32.totalorder %v133, 1
    %v136 = vsel %vm134, %v128, -inf
    %v137 = vsel %vm135, %v130, -inf
    %v138 = vsel %vm134, %v129, -inf
    %v139 = vsel %vm135, %v131, -inf
    %v140 = vmax.f32 %v113, %v136
    %v141 = vmax.f32 %v114, %v137
    %v142 = vmax.f32 %v115, %v138
    %v143 = vmax.f32 %v116, %v139
    %v148 = vcombine.low %v140, %v141
    %v149 = vcombine.low %v142, %v143
    %v152 = vmax.f32 %v86, %v148
    %v153 = vmax.f32 %v87, %v149
    %v156 = vcombine.high %v152, %v152
    %v157 = vcombine.high %v153, %v153
    %vm160 = vcmask 1043456
    %v161 = vsel %vm160, %v152, 0.0
    %v162 = vsel %vm160, %v156, 0.0
    %v163 = vadd.f32 %v161, %v162
    %v164 = vsel %vm160, %v153, 0.0
    %v165 = vadd.f32 %v163, %v164
    %v166 = vsel %vm160, %v157, 0.0
    %v167 = vadd.f32 %v165, %v166
    %168 = vadd.xlane.f32.xlu0 %v167
    %v169 = vpop.xlane.xlu0 %168
    %v170 = vmul.f32 %v169, 0.001953125
    %v173 = vunpack.c.l.s4 839922192
    %v174 = vunpack.c.0.s8 %v173
    %v175 = vlaneseq
    %v176 = vshrl.u32 %v175, 7
    %v177 = vsub.s32 %v174, %v176
    %v178 = vrot.slane %v170, %v177
    %v180 = vsub.f32 %v152, %v178
    %v181 = vsub.f32 %v153, %v178
    %v182 = vmul.f32 %v180, %v180
    %v183 = vmul.f32 %v181, %v181
    %v186 = vcombine.high %v182, %v182
    %v187 = vcombine.high %v183, %v183
    %v190 = vsel %vm160, %v182, 0.0
    %v191 = vsel %vm160, %v186, 0.0
    %v192 = vadd.f32 %v190, %v191
    %v193 = vsel %vm160, %v183, 0.0
    %v194 = vadd.f32 %v192, %v193
    %v195 = vsel %vm160, %v187, 0.0
    %v196 = vadd.f32 %v194, %v195
    %197 = vadd.xlane.f32.xlu0 %v196
    %v198 = vpop.xlane.xlu0 %197
    %v199 = vmul.f32 %v198, 0.001953125
    %v200 = vld [vmem:[%s0] sm:$0xf]
    %v201 = vadd.f32 %v199, 1e-05
    %v202 = vrsqrt.pop %v201
    %v203 = vmul.f32 %v200, %v202
    %v204 = vld [vmem:[%s1] sm:$0xf]
    %v205 = vmul.f32 %v170, %v203
    %v206 = vsub.f32 %v204, %v205
    %208 = vset.pattern.permute.xlu0 0
    %209 = vperm.xlu0 %208, %v203
    %v210 = vpop.permute.xlu0 %209
    %v212 = vunpack.c.l.s4 839922192
    %v213 = vunpack.c.0.s8 %v212
    %v214 = vlaneseq
    %v215 = vshrl.u32 %v214, 7
    %v216 = vsub.s32 %v213, %v215
    %v217 = vrot.slane %v210, %v216
    %v219 = vmul.f32 %v152, %v217
    %v220 = vmul.f32 %v153, %v217
    %222 = vset.pattern.permute.xlu0 0
    %223 = vperm.xlu0 %222, %v206
    %v224 = vpop.permute.xlu0 %223
    %v226 = vunpack.c.l.s4 839922192
    %v227 = vunpack.c.0.s8 %v226
    %v228 = vlaneseq
    %v229 = vshrl.u32 %v228, 7
    %v230 = vsub.s32 %v227, %v229
    %v231 = vrot.slane %v224, %v230
    %v233 = vadd.f32 %v219, %v231
    %v234 = vadd.f32 %v220, %v231
    %v235 = vmax.f32 %v233, 0.0
    %v236 = vmax.f32 %v234, 0.0
    %237 = vst [vmem:[#allocation2] sm:$0xff] %v235
    %238 = vst [vmem:[#allocation2 + $0x8] sm:$0xff] %v236
    // Predicated region
    $region14: #{tpu_custom_call.1} parent=1 // pred_check
      _
    $region15: #{tpu_custom_call.1} parent=1 // pred_check_branch
      %240 = sbr.rel (0) target = $region17
    $region16: #{tpu_custom_call.1} parent=1 // pred_region
      %s242 = ssub.s32 256, 256
      %243 = vsyncadd [#allocation3], %s242
      %s244 = sshll.u32 [#allocation2], 4
      %s245 = int_to_ptr.vmem [resolvable:$true] %s244
      %250 = dma.vmem_to_hbm [thread:$0]  %s245, 256, %s3, [#allocation3], 128, 128, 8
    $region17: #{tpu_custom_call.1} parent=1 // pred_fallthru
      _
    // Predicated region
    $region18: #{tpu_custom_call.1} parent=1 // pred_check
      _
    $region19: #{tpu_custom_call.1} parent=1 // pred_check_branch
      %252 = sbr.rel (0) target = $region21
    $region20: #{tpu_custom_call.1} parent=1 // pred_region
      %253 = dma.done [#allocation3], 256
    $region21: #{tpu_custom_call.1} parent=1 // pred_fallthru
      _
    %254 = vsyncpa [#allocation3], 1

</llo_original>
